<compile_context>
chip_gen: v5e
topology: v5e:2x2
jax: 0.10.0
libtpu: 0.0.40
codegen_flags: <defaults>
</compile_context>

<pallas_src>
import jax
import jax.numpy as jnp
from jax.experimental import pallas as pl
from jax.experimental.pallas import tpu as pltpu

NUM_MODELS = 3
OUT_PER_MODEL = 3

_ROW_ALIGN = 16                     # sublane multiple valid for both f32 (8) and bf16 (16)
_OUT_ROW_VMEM_BYTES = 128 * 4       # (tb, 3) f32 lane-pads to (tb, 128) in VMEM
_DEFAULT_TILE_BYTES = 4 * 1024 * 1024
_DEFAULT_VMEM_PLAN = 40 * 1024 * 1024   # total double-buffered plan budget
_VMEM_LIMIT_CAP = 48 * 1024 * 1024      # safe on v7x (64 MiB/TC physical)


def _round_up(n, m):
    return ((n + m - 1) // m) * m


def _round_down(n, m):
    return (n // m) * m


def ensemble_kernel(x_ref, w_ref, b_ref, o_ref):
    # x:  (TB, D)  f32 or bf16
    # w:  (D, 3)   same dtype as x   (folded: w_base @ w_meta)
    # b:  (1, 3)   f32               (folded: b_base @ w_meta + b_meta)
    # o:  (TB, 3)  f32
    logits = jnp.dot(x_ref[...], w_ref[...], preferred_element_type=jnp.float32)
    logits = logits + b_ref[...]
    # exp goes to the EUP slot -> free next to the DMA/MXU work.
    o_ref[...] = jax.nn.sigmoid(logits).astype(o_ref.dtype)


def actual_ensemble_forward(x, w_base, b_base, w_meta, b_meta, *,
                            compute_dtype=jnp.float32,
                            target_tile_bytes=_DEFAULT_TILE_BYTES,
                            vmem_plan_bytes=_DEFAULT_VMEM_PLAN):
    """Forward pass equivalent to ActualEnsembleModel.forward.

    x:       (B, D) f32
    w_base:  (D, 9) f32  -- 3 base-model weights, transposed & concatenated column-wise
    b_base:  (1, 9) f32
    w_meta:  (9, 3) f32  -- meta learner weight, transposed
    b_meta:  (1, 3) f32
    compute_dtype: jnp.float32 (exact) or jnp.bfloat16 (halves the dominant HBM stream).
    """
    B, D = x.shape

    # Fold the two affine layers (exact math; f32 rounding order differs slightly
    # from the unfolded reference -- within 1e-5 tolerances).
    w_eff = jnp.dot(w_base, w_meta, preferred_element_type=jnp.float32)           # (D, 3)
    b_eff = jnp.dot(b_base, w_meta, preferred_element_type=jnp.float32) + b_meta  # (1, 3)

    x_c = x.astype(compute_dtype)
    w_c = w_eff.astype(compute_dtype)
    itemsize = jnp.dtype(compute_dtype).itemsize

    # --- Byte-sized batch tile selection ---------------------------------------
    x_row_bytes = D * itemsize
    # Double-buffered x tiles + double-buffered lane-padded output tiles.
    per_row_vmem = 2 * (x_row_bytes + _OUT_ROW_VMEM_BYTES)
    tb_vmem_cap = max(_ROW_ALIGN, _round_down(vmem_plan_bytes // per_row_vmem, _ROW_ALIGN))
    tb_target = max(_ROW_ALIGN, _round_down(target_tile_bytes // x_row_bytes, _ROW_ALIGN))
    tb_max = min(tb_vmem_cap, tb_target)

    # Minimal tail padding: pad B to the sublane multiple, then split evenly.
    B_align = _round_up(B, _ROW_ALIGN)
    num_tiles = -(-B_align // tb_max)                       # ceil
    tb = _round_up(-(-B_align // num_tiles), _ROW_ALIGN)    # equal tiles, aligned
    B_pad = num_tiles * tb
    if B_pad != B:
        x_c = jnp.pad(x_c, ((0, B_pad - B), (0, 0)))        # junk rows sliced off below

    # --- VMEM plan / compiler params -------------------------------------------
    weights_vmem = 2 * _round_up(D, 8) * 128 * itemsize + 2 * 8 * 128 * 4
    vmem_plan = 2 * tb * x_row_bytes + 2 * tb * _OUT_ROW_VMEM_BYTES + weights_vmem
    vmem_limit = int(min(_VMEM_LIMIT_CAP,
                         max(16 * 1024 * 1024, vmem_plan + 4 * 1024 * 1024)))

    cost = pl.CostEstimate(
        flops=int(2 * B_pad * D * OUT_PER_MODEL + B_pad * OUT_PER_MODEL),
        transcendentals=int(B_pad * OUT_PER_MODEL),
        bytes_accessed=int(B_pad * D * itemsize
                           + B_pad * OUT_PER_MODEL * 4
                           + D * OUT_PER_MODEL * itemsize),
    )

    out = pl.pallas_call(
        ensemble_kernel,
        out_shape=jax.ShapeDtypeStruct((B_pad, OUT_PER_MODEL), jnp.float32),
        grid=(num_tiles,),
        in_specs=[
            pl.BlockSpec((tb, D), lambda i: (i, 0)),                 # streamed batch tiles
            pl.BlockSpec((D, OUT_PER_MODEL), lambda i: (0, 0)),      # VMEM-resident weight
            pl.BlockSpec((1, OUT_PER_MODEL), lambda i: (0, 0)),      # VMEM-resident bias
        ],
        out_specs=pl.BlockSpec((tb, OUT_PER_MODEL), lambda i: (i, 0)),
        compiler_params=pltpu.CompilerParams(
            dimension_semantics=("parallel",),   # independent batch tiles
            vmem_limit_bytes=vmem_limit,
        ),
        cost_estimate=cost,
    )(x_c, w_c, b_eff)
    return out[:B]


def make_params(key, input_size):
    """Deterministic parameter init mimicking nn.Linear shapes.

    Each base model i has weight (3, input_size) and bias (3,).
    Stored transposed & concatenated along the output axis:
        w_base: (input_size, 9), b_base: (1, 9)
    Meta learner: weight (3, 9) -> stored transposed as (9, 3), bias (1, 3).
    """
    keys = jax.random.split(key, 2 * NUM_MODELS + 2)
    w_cols, b_cols = [], []
    bound_base = 1.0 / jnp.sqrt(input_size)
    for i in range(NUM_MODELS):
        w_i = jax.random.uniform(
            keys[2 * i], (OUT_PER_MODEL, input_size),
            minval=-bound_base, maxval=bound_base, dtype=jnp.float32)
        b_i = jax.random.uniform(
            keys[2 * i + 1], (OUT_PER_MODEL,),
            minval=-bound_base, maxval=bound_base, dtype=jnp.float32)
        w_cols.append(w_i.T)          # (input_size, 3)
        b_cols.append(b_i)
    w_base = jnp.concatenate(w_cols, axis=1)              # (input_size, 9)
    b_base = jnp.concatenate(b_cols)[None, :]             # (1, 9)

    meta_in = NUM_MODELS * OUT_PER_MODEL
    bound_meta = 1.0 / jnp.sqrt(meta_in)
    w_meta = jax.random.uniform(
        keys[-2], (OUT_PER_MODEL, meta_in),
        minval=-bound_meta, maxval=bound_meta, dtype=jnp.float32).T   # (9, 3)
    b_meta = jax.random.uniform(
        keys[-1], (OUT_PER_MODEL,),
        minval=-bound_meta, maxval=bound_meta, dtype=jnp.float32)[None, :]  # (1, 3)
    return w_base, b_base, w_meta, b_meta


def reference_forward(x, w_base, b_base, w_meta, b_meta):
    # Unfolded path, mirroring the PyTorch module exactly.
    meta_in = x @ w_base + b_base          # cat of the 3 base Linear outputs
    logits = meta_in @ w_meta + b_meta     # meta learner
    return jax.nn.sigmoid(logits)


if __name__ == "__main__":
    key = jax.random.PRNGKey(0)
    k_x, k_p, k_x2 = jax.random.split(key, 3)

    # Small shapes consistent with the module's forward (nn.Linear over features).
    batch = 2
    input_size = 32
    x = jax.random.normal(k_x, (batch, input_size), dtype=jnp.float32)

    w_base, b_base, w_meta, b_meta = make_params(k_p, input_size)

    # 1) Small batch, single-tile path (f32, exact).
    out = actual_ensemble_forward(x, w_base, b_base, w_meta, b_meta)
    out = jax.block_until_ready(out)
    ref = reference_forward(x, w_base, b_base, w_meta, b_meta)
    assert out.shape == (batch, OUT_PER_MODEL)
    assert jnp.allclose(out, ref, atol=1e-5, rtol=1e-5), "mismatch vs JAX reference (small)"

    # 2) Larger batch with a forced multi-tile grid (small target tile bytes) to
    #    exercise the pipelined / minimal-tail-padding path.
    batch2 = 1040
    x2 = jax.random.normal(k_x2, (batch2, input_size), dtype=jnp.float32)
    ref2 = reference_forward(x2, w_base, b_base, w_meta, b_meta)

    out2 = actual_ensemble_forward(x2, w_base, b_base, w_meta, b_meta,
                                   target_tile_bytes=32 * 1024)
    out2 = jax.block_until_ready(out2)
    assert out2.shape == (batch2, OUT_PER_MODEL)
    assert jnp.allclose(out2, ref2, atol=1e-5, rtol=1e-5), "mismatch vs JAX reference (tiled)"

    # 3) Default (byte-sized) tiles at full precision.
    out3 = actual_ensemble_forward(x2, w_base, b_base, w_meta, b_meta)
    out3 = jax.block_until_ready(out3)
    assert jnp.allclose(out3, ref2, atol=1e-5, rtol=1e-5), "mismatch vs JAX reference (default tiles)"

    # 4) Optional bf16-streaming path (halves HBM traffic); looser tolerance.
    out4 = actual_ensemble_forward(x2, w_base, b_base, w_meta, b_meta,
                                   compute_dtype=jnp.bfloat16)
    out4 = jax.block_until_ready(out4)
    assert jnp.allclose(out4, ref2, atol=3e-2, rtol=0.0), "mismatch vs JAX reference (bf16)"

    print("KERNEL_OK")
</pallas_src>

<mosaic_0001>
module attributes {stable_mosaic.version = 11 : i64} {
  func.func @ensemble_kernel(%arg0: i32, %arg1: memref<16x32xf32, #tpu.memory_space<vmem>>, %arg2: memref<32x3xf32, #tpu.memory_space<vmem>>, %arg3: memref<1x3xf32, #tpu.memory_space<vmem>>, %arg4: memref<16x3xf32, #tpu.memory_space<vmem>>) attributes {dimension_semantics = [#tpu.dimension_semantics<parallel>], iteration_bounds = array<i64: 1>, scalar_prefetch = 0 : i64, scratch_operands = 0 : i64, tpu.core_type = #tpu.core_type<tc>, window_params = [{transform_indices = @transform_0, window_bounds = array<i64: 16, 32>}, {pipeline_mode = #tpu.pipeline_mode<synchronous>, transform_indices = @transform_1, window_bounds = array<i64: 32, 3>}, {pipeline_mode = #tpu.pipeline_mode<synchronous>, transform_indices = @transform_2, window_bounds = array<i64: 1, 3>}, {transform_indices = @transform_3, window_bounds = array<i64: 16, 3>}]} {
    %c0 = arith.constant 0 : index
    %c0_0 = arith.constant 0 : index
    %0 = vector.load %arg1[%c0, %c0_0] : memref<16x32xf32, #tpu.memory_space<vmem>>, vector<16x32xf32>
    %c0_1 = arith.constant 0 : index
    %c0_2 = arith.constant 0 : index
    %1 = vector.load %arg2[%c0_1, %c0_2] : memref<32x3xf32, #tpu.memory_space<vmem>>, vector<32x3xf32>
    %cst = arith.constant dense<0.000000e+00> : vector<16x3xf32>
    %2 = tpu.matmul %0, %1, %cst {dimension_numbers = #tpu.dot_dimension_numbers<[1], [0], [0], [1], [0, 0, 1, 1], [], []>} : vector<16x32xf32>, vector<32x3xf32>, vector<16x3xf32> -> vector<16x3xf32>
    %c0_3 = arith.constant 0 : index
    %c0_4 = arith.constant 0 : index
    %3 = vector.load %arg3[%c0_3, %c0_4] : memref<1x3xf32, #tpu.memory_space<vmem>>, vector<1x3xf32>
    %4 = vector.broadcast %3 : vector<1x3xf32> to vector<16x3xf32>
    %5 = arith.addf %2, %4 : vector<16x3xf32>
    %6 = arith.negf %5 : vector<16x3xf32>
    %7 = math.exp %6 : vector<16x3xf32>
    %cst_5 = arith.constant 1.000000e+00 : f32
    %8 = vector.broadcast %cst_5 : f32 to vector<16x3xf32>
    %9 = arith.addf %8, %7 : vector<16x3xf32>
    %10 = arith.divf %8, %9 : vector<16x3xf32>
    %c0_6 = arith.constant 0 : index
    %c0_7 = arith.constant 0 : index
    %11 = vector.load %arg4[%c0_6, %c0_7] : memref<16x3xf32, #tpu.memory_space<vmem>>, vector<16x3xf32>
    tpu.vector_store %arg4[%c0_6, %c0_7], %10 {strides = array<i32>} : memref<16x3xf32, #tpu.memory_space<vmem>>, vector<16x3xf32>,
    return
  }
  func.func @transform_0(%arg0: i32) -> (i32, i32) {
    %c0_i32 = arith.constant 0 : i32
    %c0_i32_0 = arith.constant 0 : i32
    return %arg0, %c0_i32 : i32, i32
  }
  func.func @transform_1(%arg0: i32) -> (i32, i32) {
    %c0_i32 = arith.constant 0 : i32
    %c0_i32_0 = arith.constant 0 : i32
    %c0_i32_1 = arith.constant 0 : i32
    return %c0_i32, %c0_i32_0 : i32, i32
  }
  func.func @transform_2(%arg0: i32) -> (i32, i32) {
    %c0_i32 = arith.constant 0 : i32
    %c0_i32_0 = arith.constant 0 : i32
    %c0_i32_1 = arith.constant 0 : i32
    return %c0_i32, %c0_i32_0 : i32, i32
  }
  func.func @transform_3(%arg0: i32) -> (i32, i32) {
    %c0_i32 = arith.constant 0 : i32
    %c0_i32_0 = arith.constant 0 : i32
    return %arg0, %c0_i32 : i32, i32
  }
}

</mosaic_0001>

<llo_original>
// kernel: tpu_custom_call.1
$region0: #{tpu_custom_call.1}
  #allocation0 [shape = 'u32[]', space=smem, size = 0x4, offset = 0x4, fixed_abs, tag = 'smem constant byte address 0x4 - core index']
  #allocation1 [shape = 'u32[72,128]{1,0:T(1,128)}', space=vmem, size = 0x9000, scoped, tag = 'internal scratch']
  %s0 = inlined_call_operand.vmem [shape: f32[16,32], index: 0, kind: input, shape index: {}]
  %s1 = inlined_call_operand.vmem [shape: f32[32,3], index: 1, kind: input, shape index: {}]
  %s2 = inlined_call_operand.vmem [shape: f32[1,3], index: 2, kind: input, shape index: {}]
  %s3 = inlined_call_operand.vmem [shape: f32[16,3], index: 3, kind: output, shape index: {}]
  %s4 = sld [smem:[#allocation0]]
  $region22: #{tpu_custom_call.1} parent=0
    _
  %s6 = ssub.s32 1, %s4
  %s7 = scalar_select 0, %s6, %s4
  // Predicated region
  $region2: #{tpu_custom_call.1} parent=0 // pred_check
    _
  $region3: #{tpu_custom_call.1} parent=0 // pred_check_branch
    %9 = sbr.rel (0) target = $region5
  $region4: #{tpu_custom_call.1} parent=0 // pred_region
    _
  $region5: #{tpu_custom_call.1} parent=0 // pred_fallthru
    _
  // Predicated region
  $region6: #{tpu_custom_call.1} parent=0 // pred_check
    _
  $region7: #{tpu_custom_call.1} parent=0 // pred_check_branch
    %11 = sbr.rel (0) target = $region9
  $region8: #{tpu_custom_call.1} parent=0 // pred_region
    _
  $region9: #{tpu_custom_call.1} parent=0 // pred_fallthru
    _
  // Predicated region
  $region10: #{tpu_custom_call.1} parent=0 // pred_check
    _
  $region11: #{tpu_custom_call.1} parent=0 // pred_check_branch
    %13 = sbr.rel (0) target = $region13
  $region12: #{tpu_custom_call.1} parent=0 // pred_region
    _
  $region13: #{tpu_custom_call.1} parent=0 // pred_fallthru
    _
  %v14 = vld [vmem:[%s0] sm:$0xff]
  %v15 = vld [vmem:[%s0 + $0x8] sm:$0xff]
  %v16 = vld [vmem:[%s1] sm:$0xff]
  %v17 = vld [vmem:[%s1 + $0x8] sm:$0xff]
  %v18 = vld [vmem:[%s1 + $0x10] sm:$0xff]
  %v19 = vld [vmem:[%s1 + $0x18] sm:$0xff]
  %v20 = vld [vmem:[%s2] sm:$0x1]
  %v22 = vperm.slane %v20, 0
  %vm24 = vcmask 261120
  %v26 = vsel %vm24, %v14, 0
  %v29 = vsel %vm24, %v15, 0
  %31 = vmatpush.msra.mxu0 0.0
  %32 = vmatpush.msra.mxu0 0.0
  %33 = vmatpush.msra.mxu0 0.0
  %34 = vmatpush.msra.mxu0 0.0
  %35 = vmatpush.msra.mxu0 0.0
  %36 = vmatpush.msra.mxu0 0.0
  %37 = vmatpush.msra.mxu0 0.0
  %38 = vmatpush.msra.mxu0 0.0
  %39 = vmatpush.msra.mxu0 0.0
  %40 = vmatpush.msra.mxu0 0.0
  %41 = vmatpush.msra.mxu0 0.0
  %42 = vmatpush.msra.mxu0 0.0
  %43 = vmatpush.msra.mxu0 %v19
  %44 = vmatpush.msra.mxu0 %v18
  %45 = vmatpush.msra.mxu0 %v17
  %46 = vmatpush.msra.mxu0 %v16
  %47 = vmatmul.f32.gmra.mxu0 %v26
  %v48 = vpop.f32.mrf.mxu0
  %v49 = vadd.f32 %v22, %v48
  %50 = vmatmul.f32.gmra.mxu0 %v29
  %v51 = vpop.f32.mrf.mxu0
  %v52 = vadd.f32 %v22, %v51
  %53 = vdwg.mxu0
  %v54 = vxor.u32 %v49, 2147483648
  %v55 = vxor.u32 %v52, 2147483648
  %v56 = vmul.f32 %v54, 1.442695
  %v57 = vpow.pop %v56
  %v58 = vmul.f32 %v55, 1.442695
  %v59 = vpow.pop %v58
  %v60 = vadd.f32 %v57, 1.0
  %v61 = vadd.f32 %v59, 1.0
  %v62 = vrcp.pop %v60
  %v63 = vmul.f32 %v60, %v62
  %v64 = vsub.f32 1.0, %v63
  %v65 = vmul.f32 %v62, %v64
  %v66 = vadd.f32 %v62, %v65
  %vm67 = vweird.f32 %v60
  %vm68 = vweird.f32 %v62
  %vm69 = vmor %vm67, %vm68
  %v70 = vsel %vm69, %v62, %v66
  %v71 = vand.u32 2147483647, %v60
  %vm72 = vcmp.eq.f32.partialorder %v71, 8.507059e+37
  %v73 = vand.u32 %v60, 2147483648
  %v74 = vor.u32 1.1754944e-38, %v73
  %v75 = vsel %vm72, %v74, %v70
  %v76 = vmul.f32 1.0, %v75
  %v77 = vrcp.pop %v61
  %v78 = vmul.f32 %v61, %v77
  %v79 = vsub.f32 1.0, %v78
  %v80 = vmul.f32 %v77, %v79
  %v81 = vadd.f32 %v77, %v80
  %vm82 = vweird.f32 %v61
  %vm83 = vweird.f32 %v77
  %vm84 = vmor %vm82, %vm83
  %v85 = vsel %vm84, %v77, %v81
  %v86 = vand.u32 2147483647, %v61
  %vm87 = vcmp.eq.f32.partialorder %v86, 8.507059e+37
  %v88 = vand.u32 %v61, 2147483648
  %v89 = vor.u32 1.1754944e-38, %v88
  %v90 = vsel %vm87, %v89, %v85
  %v91 = vmul.f32 1.0, %v90
  %vm92 = vcmask 23552
  %93 = vst.msk [vmem:[%s3] sm:$0xff] %vm92, %v76
  %94 = vst.msk [vmem:[%s3 + $0x8] sm:$0xff] %vm92, %v91
  // Predicated region
  $region14: #{tpu_custom_call.1} parent=0 // pred_check
    _
  $region15: #{tpu_custom_call.1} parent=0 // pred_check_branch
    %96 = sbr.rel (0) target = $region17
  $region16: #{tpu_custom_call.1} parent=0 // pred_region
    _
  $region17: #{tpu_custom_call.1} parent=0 // pred_fallthru
    _
  // Predicated region
  $region18: #{tpu_custom_call.1} parent=0 // pred_check
    _
  $region19: #{tpu_custom_call.1} parent=0 // pred_check_branch
    %98 = sbr.rel (0) target = $region21
  $region20: #{tpu_custom_call.1} parent=0 // pred_region
    _
  $region21: #{tpu_custom_call.1} parent=0 // pred_fallthru
    _

</llo_original>
